<compile_context>
chip_gen: v7x
topology: tpu7x:2x2x1
jax: 0.10.0
libtpu: 0.0.40
codegen_flags: <defaults>
</compile_context>

<pallas_src>
import math
from functools import partial

import jax
import jax.numpy as jnp
from jax.experimental import pallas as pl
from jax.experimental.pallas import tpu as pltpu

R = 2.5
EPS = 1e-10


def _round_up(a, b):
    return ((a + b - 1) // b) * b


def _vmem_capacity_bytes():
    try:
        return int(pltpu.get_tpu_info().vmem_capacity_bytes)
    except Exception:
        return 64 * 1024 * 1024  # conservative (v7x-sized) fallback


def _lse_kernel(x_ref, o_ref, acc_ref, *, tn, n, inv_r, log_n, n_eps, ragged_n):
    # x_ref: (tn, td) tile; o_ref: (1, td) tile; acc_ref: (acc_rows, td) f32.
    k = pl.program_id(1)               # reduction-axis step (innermost axis)
    nk = pl.num_programs(1)

    @pl.when(k == 0)
    def _init():
        acc_ref[...] = jnp.zeros_like(acc_ref)

    def _accumulate(masked):
        x = x_ref[...].astype(jnp.float32)
        # NOTE: exp(R*x) is intentionally unstabilized to match the PyTorch
        # module exactly (no max-subtraction).
        e = jnp.exp(R * x)
        if masked:
            rows = k * tn + jax.lax.broadcasted_iota(jnp.int32, (tn, 1), 0)
            e = jnp.where(rows < n, e, 0.0)
        if acc_ref.shape[0] == 8:
            # Cross-group sum = pure VPU adds; 8->1 XLU reduce deferred to
            # the finalize branch.
            acc_ref[...] += jnp.sum(e.reshape(tn // 8, 8, e.shape[-1]), axis=0)
        else:
            acc_ref[...] += jnp.sum(e, axis=0, keepdims=True)

    if ragged_n:
        @pl.when(k != nk - 1)
        def _hot():
            _accumulate(False)

        @pl.when(k == nk - 1)
        def _edge():
            _accumulate(True)
    else:
        _accumulate(False)

    @pl.when(k == nk - 1)
    def _finalize():
        s = jnp.sum(acc_ref[...], axis=0, keepdims=True)
        # log(mean + eps)/r == (log(sum + n*eps) - log(n)) / r
        o_ref[...] = ((jnp.log(s + n_eps) - log_n) * inv_r).astype(o_ref.dtype)


def _lse_small_n_kernel(x_ref, o_ref, *, inv_r, log_n, n_eps):
    # x_ref: (n, 8, td) with n < 8 -> sublanes filled by feature columns.
    x = x_ref[...].astype(jnp.float32)
    s = jnp.sum(jnp.exp(R * x), axis=0)          # cross-slab VPU adds, no XLU
    o_ref[...] = ((jnp.log(s + n_eps) - log_n) * inv_r).astype(o_ref.dtype)


def lse_pallas(x):
    """LSE over dim 0 of an arbitrary-rank array (matches PyTorch LSE(dims=0))."""
    n = int(x.shape[0])
    rest = x.shape[1:]
    d = 1
    for s in rest:
        d *= int(s)

    itemsize = jnp.dtype(x.dtype).itemsize
    inv_r = 1.0 / R
    log_n = math.log(n)
    n_eps = float(n) * EPS  # uses the TRUE n, independent of any tiling

    # Generation-aware block cap / scoped-VMEM budget.
    vmem_cap = _vmem_capacity_bytes()
    if vmem_cap >= 96 * 1024 * 1024:          # v5e / v6e (128 MiB VMEM)
        block_cap = 12 * 1024 * 1024
        vmem_limit = 64 * 1024 * 1024
    else:                                     # v7x (64 MiB VMEM)
        block_cap = 10 * 1024 * 1024
        vmem_limit = 48 * 1024 * 1024

    cost = pl.CostEstimate(
        flops=2 * n * d,
        transcendentals=n * d,
        bytes_accessed=n * d * itemsize + d * itemsize,
    )

    # ---- small-N fast path: fold features into the sublane axis ------------
    if n < 8 and d % 8 == 0 and d > 0:
        d8 = d // 8
        x3 = x.reshape(n, 8, d8)
        td = d8 if d8 <= 2048 else 2048       # full dim or 128-aligned tile
        grid = (pl.cdiv(d8, td),)
        out = pl.pallas_call(
            partial(_lse_small_n_kernel, inv_r=inv_r, log_n=log_n, n_eps=n_eps),
            out_shape=jax.ShapeDtypeStruct((8, d8), x.dtype),
            grid_spec=pltpu.PrefetchScalarGridSpec(
                num_scalar_prefetch=0,
                grid=grid,
                in_specs=[pl.BlockSpec((n, 8, td), lambda j: (0, 0, j))],
                out_specs=pl.BlockSpec((8, td), lambda j: (0, j)),
            ),
            compiler_params=pltpu.CompilerParams(
                dimension_semantics=("parallel",),
                vmem_limit_bytes=vmem_limit,
            ),
            cost_estimate=cost,
        )(x3)
        return out.reshape(rest)

    # ---- general path -------------------------------------------------------
    # Feature (lane) tile: full width when small (one contiguous DMA), ~2
    # lane-aligned tiles at medium width (feeds both v7x TCs), capped at 4096.
    if d <= 1024:
        td = d
    elif d <= 8192:
        td = _round_up(-(-d // 2), 128)
    else:
        td = 4096

    # Reduction (row) tile: cap the input block at block_cap bytes so the
    # double-buffered footprint stays well inside the scoped VMEM budget.
    tn_cap = max(8, (block_cap // (td * itemsize)) // 8 * 8)
    tn = n if n <= tn_cap else tn_cap

    num_j = pl.cdiv(d, td)
    num_k = pl.cdiv(n, tn)
    ragged_n = (n % tn) != 0
    acc_rows = 8 if (tn % 8 == 0) else 1

    x2 = x.reshape(n, d)
    kernel = partial(
        _lse_kernel, tn=tn, n=n, inv_r=inv_r, log_n=log_n, n_eps=n_eps,
        ragged_n=ragged_n,
    )

    out2 = pl.pallas_call(
        kernel,
        out_shape=jax.ShapeDtypeStruct((1, d), x.dtype),
        grid_spec=pltpu.PrefetchScalarGridSpec(
            num_scalar_prefetch=0,
            grid=(num_j, num_k),              # reduction axis innermost
            in_specs=[pl.BlockSpec((tn, td), lambda j, k: (k, j))],
            out_specs=pl.BlockSpec((1, td), lambda j, k: (0, j)),
            scratch_shapes=[pltpu.VMEM((acc_rows, td), jnp.float32)],
        ),
        compiler_params=pltpu.CompilerParams(
            dimension_semantics=("parallel", "arbitrary"),
            vmem_limit_bytes=vmem_limit,
        ),
        cost_estimate=cost,
    )(x2)

    return out2.reshape(rest)


def lse_ref(x):
    y = jnp.exp(R * x.astype(jnp.float32))
    y = jnp.mean(y, axis=0)
    return (jnp.log(y + EPS) / R).astype(x.dtype)


if __name__ == "__main__":
    key = jax.random.PRNGKey(0)
    x = jax.random.normal(key, (2, 4, 16, 16), dtype=jnp.float32)

    out = jax.block_until_ready(lse_pallas(x))
    ref = lse_ref(x)

    assert out.shape == (4, 16, 16), out.shape
    assert jnp.allclose(out, ref, atol=1e-5, rtol=1e-5), (
        float(jnp.max(jnp.abs(out - ref)))
    )
    print("KERNEL_OK")
</pallas_src>

<mosaic_0001>
module attributes {stable_mosaic.version = 11 : i64} {
  func.func @_lse_small_n_kernel(%arg0: i32, %arg1: memref<2x8x128xf32, #tpu.memory_space<vmem>>, %arg2: memref<8x128xf32, #tpu.memory_space<vmem>>) attributes {dimension_semantics = [#tpu.dimension_semantics<parallel>], iteration_bounds = array<i64: 1>, scalar_prefetch = 0 : i64, scratch_operands = 0 : i64, tpu.core_type = #tpu.core_type<tc>, window_params = [{transform_indices = @transform_0, window_bounds = array<i64: 2, 8, 128>}, {transform_indices = @transform_1, window_bounds = array<i64: 8, 128>}]} {
    %c0 = arith.constant 0 : index
    %c0_0 = arith.constant 0 : index
    %c0_1 = arith.constant 0 : index
    %0 = vector.load %arg1[%c0, %c0_0, %c0_1] : memref<2x8x128xf32, #tpu.memory_space<vmem>>, vector<2x8x128xf32>
    %cst = arith.constant 2.500000e+00 : f32
    %1 = vector.broadcast %cst : f32 to vector<2x8x128xf32>
    %2 = arith.mulf %1, %0 : vector<2x8x128xf32>
    %3 = math.exp %2 : vector<2x8x128xf32>
    %cst_2 = arith.constant dense<0.000000e+00> : vector<8x128xf32>
    %4 = vector.multi_reduction <add>, %3, %cst_2 [0] : vector<2x8x128xf32> to vector<8x128xf32>
    %cst_3 = arith.constant 2.000000e-10 : f32
    %5 = vector.broadcast %cst_3 : f32 to vector<8x128xf32>
    %6 = arith.addf %4, %5 : vector<8x128xf32>
    %7 = math.log %6 : vector<8x128xf32>
    %cst_4 = arith.constant 0.693147182 : f32
    %8 = vector.broadcast %cst_4 : f32 to vector<8x128xf32>
    %9 = arith.subf %7, %8 : vector<8x128xf32>
    %cst_5 = arith.constant 4.000000e-01 : f32
    %10 = vector.broadcast %cst_5 : f32 to vector<8x128xf32>
    %11 = arith.mulf %9, %10 : vector<8x128xf32>
    %c0_6 = arith.constant 0 : index
    %c0_7 = arith.constant 0 : index
    %12 = vector.load %arg2[%c0_6, %c0_7] : memref<8x128xf32, #tpu.memory_space<vmem>>, vector<8x128xf32>
    tpu.vector_store %arg2[%c0_6, %c0_7], %11 {strides = array<i32>} : memref<8x128xf32, #tpu.memory_space<vmem>>, vector<8x128xf32>,
    return
  }
  func.func @transform_0(%arg0: i32) -> (i32, i32, i32) {
    %c0_i32 = arith.constant 0 : i32
    %c0_i32_0 = arith.constant 0 : i32
    %c0_i32_1 = arith.constant 0 : i32
    return %c0_i32, %c0_i32_0, %arg0 : i32, i32, i32
  }
  func.func @transform_1(%arg0: i32) -> (i32, i32) {
    %c0_i32 = arith.constant 0 : i32
    %c0_i32_0 = arith.constant 0 : i32
    return %c0_i32, %arg0 : i32, i32
  }
}

</mosaic_0001>

<llo_original>
// kernel: tpu_custom_call.1
$region0: #{tpu_custom_call.1}
  #allocation0 [shape = 'u32[]', space=smem, size = 0x4, offset = 0x4, fixed_abs, tag = 'smem constant byte address 0x4 - core index']
  #allocation1 [shape = 'u32[144,128]{1,0:T(1,128)}', space=vmem, size = 0x12000, scoped, tag = 'internal scratch']
  %s0 = inlined_call_operand.hbm [shape: f32[2,8,128], index: 0, kind: input, shape index: {}]
  %s1 = inlined_call_operand.hbm [shape: f32[8,128], index: 1, kind: output, shape index: {}]
  %s2 = sld [smem:[#allocation0]]
  $region18: #{tpu_custom_call.1} parent=0
    _
  %s4 = ssub.s32 1, %s2
  %s5 = scalar_select 0, %s4, %s2
  $region1: #{tpu_custom_call.1} parent=0
    #allocation2 [shape = 'u8[8192]{0}', space=vmem, size = 0x2000, scoped, tag = 'input window, operand 0, single buffered']
    #allocation3 [shape = 's32[1]{0}', space=sflag, size = 0x4, scoped, tag = 'scoped memory for tpu_custom_call.1']
    #allocation4 [shape = 's32[1]{0}', space=sflag, size = 0x4, scoped, tag = 'scoped memory for tpu_custom_call.1']
    #allocation5 [shape = 'u8[4096]{0}', space=vmem, size = 0x1000, scoped, tag = 'output window, operand 0, single buffered']
    %6 = vsyncpa [#allocation3], 0
    %7 = vsyncpa [#allocation4], 0
    // Predicated region
    $region2: #{tpu_custom_call.1} parent=1 // pred_check
      _
    $region3: #{tpu_custom_call.1} parent=1 // pred_check_branch
      %9 = sbr.rel (0) target = $region5
    $region4: #{tpu_custom_call.1} parent=1 // pred_region
      %s11 = ssub.s32 256, 256
      %12 = vsyncadd [#allocation3], %s11
      %s13 = sshll.u32 [#allocation2], 4
      %s14 = int_to_ptr.vmem [resolvable:$true] %s13
      %19 = dma.hbm_to_vmem [thread:$0]  %s0, 256, %s14, [#allocation3], 128, 128, 8
    $region5: #{tpu_custom_call.1} parent=1 // pred_fallthru
      _
    // Predicated region
    $region6: #{tpu_custom_call.1} parent=1 // pred_check
      _
    $region7: #{tpu_custom_call.1} parent=1 // pred_check_branch
      %21 = sbr.rel (0) target = $region9
    $region8: #{tpu_custom_call.1} parent=1 // pred_region
      %22 = dma.done [#allocation3], 256
    $region9: #{tpu_custom_call.1} parent=1 // pred_fallthru
      _
    %v23 = vld [vmem:[#allocation2] sm:$0xff]
    %v24 = vld [vmem:[#allocation2 + $0x8] sm:$0xff]
    %v25 = vmul.f32 %v23, 2.5
    %v26 = vmul.f32 %v24, 2.5
    %v27 = vmul.f32 %v25, 1.442695
    %v28 = vpow.pop %v27
    %v29 = vmul.f32 %v26, 1.442695
    %v30 = vpow.pop %v29
    %v31 = vadd.f32 %v28, %v30
    %v32 = vadd.f32 %v31, 2e-10
    %v33 = vlog2.pop %v32
    %v34 = vmul.f32 %v33, 0.6931472
    %v35 = vsub.f32 %v34, 0.6931472
    %v36 = vmul.f32 %v35, 0.4
    %37 = vst [vmem:[#allocation5] sm:$0xff] %v36
    // Predicated region
    $region10: #{tpu_custom_call.1} parent=1 // pred_check
      _
    $region11: #{tpu_custom_call.1} parent=1 // pred_check_branch
      %39 = sbr.rel (0) target = $region13
    $region12: #{tpu_custom_call.1} parent=1 // pred_region
      %s41 = ssub.s32 128, 128
      %42 = vsyncadd [#allocation4], %s41
      %s44 = sshll.u32 [#allocation5], 4
      %s45 = int_to_ptr.vmem [resolvable:$true] %s44
      %47 = dma.vmem_to_hbm [thread:$0]  %s45, 128, %s1, [#allocation4]
    $region13: #{tpu_custom_call.1} parent=1 // pred_fallthru
      _
    // Predicated region
    $region14: #{tpu_custom_call.1} parent=1 // pred_check
      _
    $region15: #{tpu_custom_call.1} parent=1 // pred_check_branch
      %49 = sbr.rel (0) target = $region17
    $region16: #{tpu_custom_call.1} parent=1 // pred_region
      %50 = dma.done [#allocation4], 128
    $region17: #{tpu_custom_call.1} parent=1 // pred_fallthru
      _
    %51 = vsyncpa [#allocation3], 1
    %52 = vsyncpa [#allocation4], 1

</llo_original>
